<compile_context>
chip_gen: v6e
topology: v6e:2x2x1
jax: 0.10.0
libtpu: 0.0.40
codegen_flags: <defaults>
</compile_context>

<pallas_src>
import functools
import math

import jax
import jax.numpy as jnp
from jax.experimental import pallas as pl
from jax.experimental.pallas import tpu as pltpu


def _self_attention_kernel(x_ref, wqkv_ref, wu_ref, bu_ref, o_ref, *,
                           heads, seq_len, masked, approx_softmax):
    rows, k = x_ref.shape            # rows = block_b * seq_len (static)
    t = seq_len
    bb = rows // t                   # batch rows handled in this grid step
    hk = heads * k
    cdt = x_ref.dtype                # MXU operand dtype (f32 or bf16)
    scale = jnp.float32(1.0 / math.sqrt(k))

    # --- Fused Q/K/V projection: ONE (rows, K) x (K, 3*H*K) MXU matmul with
    #     f32 accumulation (free on the MXU). ---
    qkv = jnp.dot(x_ref[...], wqkv_ref[...],
                  preferred_element_type=jnp.float32)           # (rows, 3*H*K)

    # --- Single relayout to head-major: H static lane slices per tensor
    #     (3*H total, independent of bb), stacked on a leading batch axis
    #     g = h * bb + b.  Relayout is done once, in f32. ---
    def heads_major(which):          # which: 0 = Q, 1 = K, 2 = V
        base = which * hk
        parts = [qkv[:, base + h * k: base + (h + 1) * k].reshape(bb, t, k)
                 for h in range(heads)]
        return parts[0] if heads == 1 else jnp.concatenate(parts, axis=0)

    qh = (heads_major(0) * scale).astype(cdt)   # 1/sqrt(k) folded into Q once
    kh = heads_major(1).astype(cdt)             # (G, T, K), G = H*bb
    vh = heads_major(2).astype(cdt)

    # --- Scores for every (head, batch row) in one batched contraction
    #     (contract last dims; no explicit K^T). ---
    logits = jnp.einsum('gqd,gkd->gqk', qh, kh,
                        preferred_element_type=jnp.float32)     # (G, T, T) f32

    if masked:                        # causal bias built once, reused for all g
        rid = jax.lax.broadcasted_iota(jnp.int32, (t, t), 0)
        cid = jax.lax.broadcasted_iota(jnp.int32, (t, t), 1)
        bias = jnp.where(cid > rid, jnp.float32(-1e30), jnp.float32(0.0))
        logits = logits + bias[None, :, :]

    # --- Softmax over keys, vectorized over all G*T rows (f32). ---
    m = jnp.max(logits, axis=-1, keepdims=True)
    e = jnp.exp(logits - m)
    s = jnp.sum(e, axis=-1, keepdims=True)
    if approx_softmax:
        p = e * pl.reciprocal(s, approx=True)                   # EUP slot
    else:
        p = e / s                                               # exact path

    # --- Weighted values, f32 accumulation on the MXU. ---
    ctx = jnp.einsum('gqk,gkd->gqd', p.astype(cdt), vh,
                     preferred_element_type=jnp.float32)        # (G, T, K) f32

    # --- Unify heads: lane-concat per-head contexts back to (rows, H*K) and
    #     run ONE matmul against Wu; bias added once per grid step. ---
    pieces = [ctx[h * bb:(h + 1) * bb].reshape(rows, k).astype(cdt)
              for h in range(heads)]
    cat = pieces[0] if heads == 1 else jnp.concatenate(pieces, axis=-1)
    out = jnp.dot(cat, wu_ref[...], preferred_element_type=jnp.float32)
    out = out + bu_ref[...]                                     # (rows,K)+(1,K)
    o_ref[...] = out.astype(o_ref.dtype)


def self_attention(x, wq, wk, wv, wu, bu, *, heads, masked=False,
                   block_b=None, compute_dtype=None, approx_softmax=True):
    """x: (B, T, K). wq/wk/wv: (K, H*K). wu: (H*K, K). bu: (1, K)."""
    b, t, k = x.shape
    hk = heads * k
    assert wq.shape == (k, hk) and wk.shape == (k, hk) and wv.shape == (k, hk)
    assert wu.shape == (hk, k) and bu.shape == (1, k)
    if t % 8:
        # TODO(synk): pad T up to the 8-sublane tile for arbitrary seq lengths.
        raise NotImplementedError("seq_len must be a multiple of 8")

    cdt = x.dtype if compute_dtype is None else compute_dtype

    # Fused projection weight -> one MXU weight push, 3x wider N dimension.
    wqkv = jnp.concatenate([wq, wk, wv], axis=1).astype(cdt)     # (K, 3*H*K)
    wuc = wu.astype(cdt)
    buf = bu.astype(jnp.float32)          # bias added to the f32 accumulator
    x2d = x.reshape(b * t, k).astype(cdt)  # row-major: free layout change

    # Generation-aware VMEM budget (v5e/v6e: 128 MiB physical, v7x: 64 MiB).
    try:
        vmem_cap = int(pltpu.get_tpu_info().vmem_capacity_bytes)
    except Exception:
        vmem_cap = 64 * 1024 * 1024
    vmem_limit = int(min((vmem_cap * 3) // 4, 96 * 1024 * 1024))

    if block_b is None:
        # Keep >=2 grid steps when B >= 2 so the "parallel" axis can be split
        # across TensorCores (v7x megacore), capped by a per-step VMEM budget.
        block_b = b // 2 if b >= 2 else 1
        esz = jnp.dtype(cdt).itemsize
        per_row = (t * k * (esz + x.dtype.itemsize)       # x block + out block
                   + t * 3 * hk * (4 + esz)               # fused qkv + head-major
                   + heads * t * t * (8 + esz)            # logits + exp + probs
                   + t * hk * (4 + esz))                  # ctx + concat
        block_b = max(1, min(block_b, (vmem_limit // 3) // max(per_row, 1)))
    block_b = int(max(1, min(block_b, b)))
    while b % block_b:
        block_b -= 1
    rows_blk = block_b * t

    kernel = functools.partial(
        _self_attention_kernel, heads=heads, seq_len=t, masked=masked,
        approx_softmax=approx_softmax)

    def const_spec(arr):
        # Index map is constant across the grid -> single-buffer to save VMEM.
        nd = arr.ndim
        idx = lambda i, _nd=nd: (0,) * _nd
        try:
            return pl.BlockSpec(arr.shape, idx, pipeline_mode=pl.Buffered(1))
        except (TypeError, AttributeError):
            return pl.BlockSpec(arr.shape, idx)

    out2d = pl.pallas_call(
        kernel,
        out_shape=jax.ShapeDtypeStruct((b * t, k), x.dtype),
        grid_spec=pltpu.PrefetchScalarGridSpec(
            num_scalar_prefetch=0,
            grid=(b // block_b,),
            in_specs=[
                pl.BlockSpec((rows_blk, k), lambda i: (i, 0)),   # x rows
                const_spec(wqkv),                                # fused Wqkv
                const_spec(wuc),                                 # Wu
                const_spec(buf),                                 # bias
            ],
            out_specs=pl.BlockSpec((rows_blk, k), lambda i: (i, 0)),
        ),
        compiler_params=pltpu.CompilerParams(
            dimension_semantics=("parallel",),
            vmem_limit_bytes=vmem_limit),
    )(x2d, wqkv, wuc, buf)

    return out2d.reshape(b, t, k)


def _reference(x, wq, wk, wv, wu, bu, *, heads, masked):
    """Pure-JAX mirror of the PyTorch forward, for verification."""
    b, t, k = x.shape
    h = heads
    scale = k ** 0.25
    q = (x @ wq).reshape(b, t, h, k).transpose(0, 2, 1, 3) / scale   # (b,h,t,k)
    kk = (x @ wk).reshape(b, t, h, k).transpose(0, 2, 1, 3) / scale
    v = (x @ wv).reshape(b, t, h, k).transpose(0, 2, 1, 3)
    dot = jnp.einsum("bhqd,bhkd->bhqk", q, kk)
    if masked:
        mask = jnp.triu(jnp.ones((t, t), bool), k=1)
        dot = jnp.where(mask, -jnp.inf, dot)
    dot = jax.nn.softmax(dot, axis=-1)
    out = jnp.einsum("bhqk,bhkd->bhqd", dot, v)                      # (b,h,t,k)
    out = out.transpose(0, 2, 1, 3).reshape(b, t, h * k)
    return out @ wu + bu[0]


if __name__ == "__main__":
    B, T, K, HEADS = 2, 8, 32, 2
    MASKED = True

    key = jax.random.PRNGKey(0)
    kx, k1, k2, k3, k4, k5 = jax.random.split(key, 6)

    x = jax.random.normal(kx, (B, T, K), dtype=jnp.float32)

    # Deterministic parameter init (uniform, PyTorch-Linear-like fan-in scaling).
    lim_proj = 1.0 / math.sqrt(K)
    lim_uni = 1.0 / math.sqrt(HEADS * K)
    wq = jax.random.uniform(k1, (K, K * HEADS), jnp.float32, -lim_proj, lim_proj)
    wk = jax.random.uniform(k2, (K, K * HEADS), jnp.float32, -lim_proj, lim_proj)
    wv = jax.random.uniform(k3, (K, K * HEADS), jnp.float32, -lim_proj, lim_proj)
    wu = jax.random.uniform(k4, (HEADS * K, K), jnp.float32, -lim_uni, lim_uni)
    bu = jax.random.uniform(k5, (1, K), jnp.float32, -lim_uni, lim_uni)

    ref = _reference(x, wq, wk, wv, wu, bu, heads=HEADS, masked=MASKED)

    # 1) Tight correctness anchor: f32, exact softmax divide, default blocking
    #    (block_b=1 -> two "parallel" grid steps for megacore).
    out = self_attention(x, wq, wk, wv, wu, bu, heads=HEADS, masked=MASKED,
                         approx_softmax=False)
    out = jax.block_until_ready(out)
    assert out.shape == (B, T, K)
    assert jnp.allclose(out, ref, atol=1e-4, rtol=1e-4), "mismatch (exact path)"

    # 2) Optimized softmax path (EUP approximate reciprocal) with the whole
    #    batch in one grid step (exercises the bb > 1 head-major relayout).
    out_a = self_attention(x, wq, wk, wv, wu, bu, heads=HEADS, masked=MASKED,
                           block_b=B)
    out_a = jax.block_until_ready(out_a)
    assert jnp.allclose(out_a, ref, atol=1e-2, rtol=1e-2), "mismatch (approx path)"

    # 3) bf16 MXU path (v6e/v7x): bf16 operands, f32 accumulation/softmax.
    out_b = self_attention(x, wq, wk, wv, wu, bu, heads=HEADS, masked=MASKED,
                           compute_dtype=jnp.bfloat16)
    out_b = jax.block_until_ready(out_b)
    assert jnp.allclose(out_b, ref, atol=2e-2, rtol=2e-2), "mismatch (bf16 path)"

    print("KERNEL_OK")
</pallas_src>

<mosaic_0001>
module attributes {stable_mosaic.version = 11 : i64} {
  func.func @_self_attention_kernel(%arg0: i32, %arg1: memref<8x32xf32, #tpu.memory_space<vmem>>, %arg2: memref<32x192xf32, #tpu.memory_space<vmem>>, %arg3: memref<64x32xf32, #tpu.memory_space<vmem>>, %arg4: memref<1x32xf32, #tpu.memory_space<vmem>>, %arg5: memref<8x32xf32, #tpu.memory_space<vmem>>) attributes {dimension_semantics = [#tpu.dimension_semantics<parallel>], iteration_bounds = array<i64: 2>, scalar_prefetch = 0 : i64, scratch_operands = 0 : i64, tpu.core_type = #tpu.core_type<tc>, window_params = [{transform_indices = @transform_0, window_bounds = array<i64: 8, 32>}, {pipeline_mode = #tpu.pipeline_mode<synchronous>, transform_indices = @transform_1, window_bounds = array<i64: 32, 192>}, {pipeline_mode = #tpu.pipeline_mode<synchronous>, transform_indices = @transform_2, window_bounds = array<i64: 64, 32>}, {pipeline_mode = #tpu.pipeline_mode<synchronous>, transform_indices = @transform_3, window_bounds = array<i64: 1, 32>}, {transform_indices = @transform_4, window_bounds = array<i64: 8, 32>}]} {
    %c0 = arith.constant 0 : index
    %c0_0 = arith.constant 0 : index
    %0 = vector.load %arg1[%c0, %c0_0] : memref<8x32xf32, #tpu.memory_space<vmem>>, vector<8x32xf32>
    %c0_1 = arith.constant 0 : index
    %c0_2 = arith.constant 0 : index
    %1 = vector.load %arg2[%c0_1, %c0_2] : memref<32x192xf32, #tpu.memory_space<vmem>>, vector<32x192xf32>
    %cst = arith.constant dense<0.000000e+00> : vector<8x192xf32>
    %2 = tpu.matmul %0, %1, %cst {dimension_numbers = #tpu.dot_dimension_numbers<[1], [0], [0], [1], [0, 0, 1, 1], [], []>} : vector<8x32xf32>, vector<32x192xf32>, vector<8x192xf32> -> vector<8x192xf32>
    %3 = vector.extract_strided_slice %2 {offsets = [0, 0], sizes = [8, 32], strides = [1, 1]} : vector<8x192xf32> to vector<8x32xf32>
    %4 = vector.shape_cast %3 : vector<8x32xf32> to vector<1x8x32xf32>
    %5 = vector.extract_strided_slice %2 {offsets = [0, 32], sizes = [8, 32], strides = [1, 1]} : vector<8x192xf32> to vector<8x32xf32>
    %6 = vector.shape_cast %5 : vector<8x32xf32> to vector<1x8x32xf32>
    %7 = tpu.concatenate %4, %6 in 0 : vector<1x8x32xf32>, vector<1x8x32xf32> -> vector<2x8x32xf32>
    %cst_3 = arith.constant 0.176776692 : f32
    %8 = vector.broadcast %cst_3 : f32 to vector<2x8x32xf32>
    %9 = arith.mulf %7, %8 : vector<2x8x32xf32>
    %10 = vector.extract_strided_slice %2 {offsets = [0, 64], sizes = [8, 32], strides = [1, 1]} : vector<8x192xf32> to vector<8x32xf32>
    %11 = vector.shape_cast %10 : vector<8x32xf32> to vector<1x8x32xf32>
    %12 = vector.extract_strided_slice %2 {offsets = [0, 96], sizes = [8, 32], strides = [1, 1]} : vector<8x192xf32> to vector<8x32xf32>
    %13 = vector.shape_cast %12 : vector<8x32xf32> to vector<1x8x32xf32>
    %14 = tpu.concatenate %11, %13 in 0 : vector<1x8x32xf32>, vector<1x8x32xf32> -> vector<2x8x32xf32>
    %15 = vector.extract_strided_slice %2 {offsets = [0, 128], sizes = [8, 32], strides = [1, 1]} : vector<8x192xf32> to vector<8x32xf32>
    %16 = vector.shape_cast %15 : vector<8x32xf32> to vector<1x8x32xf32>
    %17 = vector.extract_strided_slice %2 {offsets = [0, 160], sizes = [8, 32], strides = [1, 1]} : vector<8x192xf32> to vector<8x32xf32>
    %18 = vector.shape_cast %17 : vector<8x32xf32> to vector<1x8x32xf32>
    %19 = tpu.concatenate %16, %18 in 0 : vector<1x8x32xf32>, vector<1x8x32xf32> -> vector<2x8x32xf32>
    "tpu.trace_start"() <{level = 10 : i32, message = "gqd,gkd->gqk"}> : () -> ()
    %cst_4 = arith.constant dense<0.000000e+00> : vector<2x8x8xf32>
    %20 = tpu.matmul %9, %14, %cst_4 {dimension_numbers = #tpu.dot_dimension_numbers<[2], [2], [1], [1], [0, 0, 0, 1, 1, 1], [0], [0]>} : vector<2x8x32xf32>, vector<2x8x32xf32>, vector<2x8x8xf32> -> vector<2x8x8xf32>
    "tpu.trace_stop"() : () -> ()
    %21 = tpu.iota {dimensions = array<i32: 0>} : vector<8x8xi32>
    %22 = tpu.iota {dimensions = array<i32: 1>} : vector<8x8xi32>
    %23 = arith.cmpi sgt, %22, %21 : vector<8x8xi32>
    %cst_5 = arith.constant -1.000000e+30 : f32
    %cst_6 = arith.constant 0.000000e+00 : f32
    %24 = vector.broadcast %cst_5 : f32 to vector<8x8xf32>
    %25 = vector.broadcast %cst_6 : f32 to vector<8x8xf32>
    %26 = arith.select %23, %24, %25 : vector<8x8xi1>, vector<8x8xf32>
    %27 = vector.shape_cast %26 : vector<8x8xf32> to vector<1x8x8xf32>
    %28 = vector.broadcast %27 : vector<1x8x8xf32> to vector<2x8x8xf32>
    %29 = arith.addf %20, %28 : vector<2x8x8xf32>
    %cst_7 = arith.constant dense<0xFF800000> : vector<2x8xf32>
    %30 = vector.multi_reduction <maximumf>, %29, %cst_7 [2] : vector<2x8x8xf32> to vector<2x8xf32>
    %31 = vector.shape_cast %30 : vector<2x8xf32> to vector<2x8x1xf32>
    %32 = vector.broadcast %31 : vector<2x8x1xf32> to vector<2x8x8xf32>
    %33 = arith.subf %29, %32 : vector<2x8x8xf32>
    %34 = math.exp %33 : vector<2x8x8xf32>
    %cst_8 = arith.constant dense<0.000000e+00> : vector<2x8xf32>
    %35 = vector.multi_reduction <add>, %34, %cst_8 [2] : vector<2x8x8xf32> to vector<2x8xf32>
    %36 = vector.shape_cast %35 : vector<2x8xf32> to vector<2x8x1xf32>
    %37 = vector.broadcast %36 : vector<2x8x1xf32> to vector<2x8x8xf32>
    %38 = arith.divf %34, %37 : vector<2x8x8xf32>
    "tpu.trace_start"() <{level = 10 : i32, message = "gqk,gkd->gqd"}> : () -> ()
    %cst_9 = arith.constant dense<0.000000e+00> : vector<2x8x32xf32>
    %39 = tpu.matmul %38, %19, %cst_9 {dimension_numbers = #tpu.dot_dimension_numbers<[2], [1], [1], [2], [0, 0, 0, 1, 1, 2], [0], [0]>} : vector<2x8x8xf32>, vector<2x8x32xf32>, vector<2x8x32xf32> -> vector<2x8x32xf32>
    "tpu.trace_stop"() : () -> ()
    %40 = vector.extract_strided_slice %39 {offsets = [0, 0, 0], sizes = [1, 8, 32], strides = [1, 1, 1]} : vector<2x8x32xf32> to vector<1x8x32xf32>
    %41 = vector.shape_cast %40 : vector<1x8x32xf32> to vector<8x32xf32>
    %42 = vector.extract_strided_slice %39 {offsets = [1, 0, 0], sizes = [1, 8, 32], strides = [1, 1, 1]} : vector<2x8x32xf32> to vector<1x8x32xf32>
    %43 = vector.shape_cast %42 : vector<1x8x32xf32> to vector<8x32xf32>
    %44 = tpu.concatenate %41, %43 in 1 : vector<8x32xf32>, vector<8x32xf32> -> vector<8x64xf32>
    %c0_10 = arith.constant 0 : index
    %c0_11 = arith.constant 0 : index
    %45 = vector.load %arg3[%c0_10, %c0_11] : memref<64x32xf32, #tpu.memory_space<vmem>>, vector<64x32xf32>
    %cst_12 = arith.constant dense<0.000000e+00> : vector<8x32xf32>
    %46 = tpu.matmul %44, %45, %cst_12 {dimension_numbers = #tpu.dot_dimension_numbers<[1], [0], [0], [1], [0, 0, 1, 1], [], []>} : vector<8x64xf32>, vector<64x32xf32>, vector<8x32xf32> -> vector<8x32xf32>
    %c0_13 = arith.constant 0 : index
    %c0_14 = arith.constant 0 : index
    %47 = vector.load %arg4[%c0_13, %c0_14] : memref<1x32xf32, #tpu.memory_space<vmem>>, vector<1x32xf32>
    %48 = vector.broadcast %47 : vector<1x32xf32> to vector<8x32xf32>
    %49 = arith.addf %46, %48 : vector<8x32xf32>
    %c0_15 = arith.constant 0 : index
    %c0_16 = arith.constant 0 : index
    %50 = vector.load %arg5[%c0_15, %c0_16] : memref<8x32xf32, #tpu.memory_space<vmem>>, vector<8x32xf32>
    tpu.vector_store %arg5[%c0_15, %c0_16], %49 {strides = array<i32>} : memref<8x32xf32, #tpu.memory_space<vmem>>, vector<8x32xf32>,
    return
  }
  func.func @transform_0(%arg0: i32) -> (i32, i32) {
    %c0_i32 = arith.constant 0 : i32
    %c0_i32_0 = arith.constant 0 : i32
    return %arg0, %c0_i32 : i32, i32
  }
  func.func @transform_1(%arg0: i32) -> (i32, i32) {
    %c0_i32 = arith.constant 0 : i32
    %c0_i32_0 = arith.constant 0 : i32
    %c0_i32_1 = arith.constant 0 : i32
    return %c0_i32, %c0_i32_0 : i32, i32
  }
  func.func @transform_2(%arg0: i32) -> (i32, i32) {
    %c0_i32 = arith.constant 0 : i32
    %c0_i32_0 = arith.constant 0 : i32
    %c0_i32_1 = arith.constant 0 : i32
    return %c0_i32, %c0_i32_0 : i32, i32
  }
  func.func @transform_3(%arg0: i32) -> (i32, i32) {
    %c0_i32 = arith.constant 0 : i32
    %c0_i32_0 = arith.constant 0 : i32
    %c0_i32_1 = arith.constant 0 : i32
    return %c0_i32, %c0_i32_0 : i32, i32
  }
  func.func @transform_4(%arg0: i32) -> (i32, i32) {
    %c0_i32 = arith.constant 0 : i32
    %c0_i32_0 = arith.constant 0 : i32
    return %arg0, %c0_i32 : i32, i32
  }
}

</mosaic_0001>

<llo_original>
// kernel: tpu_custom_call.1
$region0: #{tpu_custom_call.1}
  #allocation0 [shape = 'u32[]', space=smem, size = 0x4, offset = 0x4, fixed_abs, tag = 'smem constant byte address 0x4 - core index']
  #allocation1 [shape = 'u32[144,128]{1,0:T(1,128)}', space=vmem, size = 0x12000, scoped, tag = 'internal scratch']
  %s0 = inlined_call_operand.vmem [shape: f32[16,32], index: 0, kind: input, shape index: {}]
  %s1 = inlined_call_operand.vmem [shape: f32[32,192], index: 1, kind: input, shape index: {}]
  %s2 = inlined_call_operand.vmem [shape: f32[64,32], index: 2, kind: input, shape index: {}]
  %s3 = inlined_call_operand.vmem [shape: f32[1,32], index: 3, kind: input, shape index: {}]
  %s4 = inlined_call_operand.hbm [shape: f32[16,32], index: 4, kind: output, shape index: {}]
  %s5 = sld [smem:[#allocation0]]
  $region49: #{tpu_custom_call.1} parent=0
    _
  %s7 = ssub.s32 1, %s5
  %s8 = scalar_select 0, %s7, %s5
  $region1: #{tpu_custom_call.1} parent=0
    #allocation2 [shape = 'u8[8192]{0}', space=vmem, size = 0x2000, scoped, tag = 'output window, operand 0']
    #allocation3 [shape = 's32[2]{0}', space=sflag, size = 0x8, scoped, tag = 'scoped memory for tpu_custom_call.1']
    %9 = vsyncpa [#allocation3], 0
    %s10 = scalar_lea.sflag [#allocation3], 1
    %11 = vsyncpa %s10, 0
    loop: start=0, step=1, limit=4
    $region2: #{tpu_custom_call.1} parent=1 // loop_pre_header
      _
    $region3: #{tpu_custom_call.1} parent=1 // loop_header
      %s13 = sphi 0, %s17
      %p14 = scmp.ge.s32.totalorder %s13, 4
      %s23 = sphi 0, %s25
      %s26 = sphi 0, %s23
      %s27 = sphi 0, %s26
      %s43 = sphi 0, %s27
      %s47 = sphi 0, %s47
      %s49 = sphi 0, %s47
      %s50 = sphi 0, %s49
      %s64 = sphi 0, %s50
      %s68 = sphi 0, %s68
      %s70 = sphi 0, %s68
      %s71 = sphi 0, %s70
      %s85 = sphi 0, %s71
      %s89 = sphi 0, %s89
      %s91 = sphi 0, %s89
      %s92 = sphi 0, %s91
      %s106 = sphi 0, %s92
      %s112 = sphi 0, %s114
      %s115 = sphi 0, %s112
      %s116 = sphi 0, %s115
      %s132 = sphi 0, %s116
    $region4: #{tpu_custom_call.1} parent=1 // loop_header_branch
      %16 = sbr.rel (%p14) target = $region8
    $region5: #{tpu_custom_call.1} parent=1 // loop_body
      %s18 = ssub.s32 %s13, 1
      %s19 = ssub.s32 %s13, 2
      %s20 = sadd.s32 %s13, 1
      %s21 = ssub.s32 %s13, %s20
      %p22 = scmp.eq.s32.totalorder %s21, 0
      %s24 = sadd.s32 %s23, 1
      %s25 = scalar_select %p22, %s23, %s24
      %p28 = pneg %p22
      %p29 = scmp.eq.s32.totalorder %s13, 1
      %p30 = por %p28, %p29
      %p31 = scmp.ne.s32.totalorder %s23, %s26
      %p32 = scmp.eq.s32.totalorder %s13, 0
      %p33 = por %p31, %p32
      %p34 = scmp.ne.s32.totalorder %s23, %s26
      %p35 = scmp.eq.s32.totalorder %s18, 1
      %p36 = por %p34, %p35
      %p37 = scmp.ne.s32.totalorder %s26, %s27
      %p38 = scmp.eq.s32.totalorder %s18, 0
      %p39 = por %p37, %p38
      %p40 = scmp.ne.s32.totalorder %s26, %s27
      %p41 = scmp.eq.s32.totalorder %s19, 1
      %p42 = por %p40, %p41
      %p44 = scmp.ne.s32.totalorder %s27, %s43
      %p45 = scmp.eq.s32.totalorder %s19, 0
      %p46 = por %p44, %p45
      %s48 = sadd.s32 %s47, 1
      %p51 = scmp.eq.s32.totalorder %s13, 1
      %p52 = scmp.ne.s32.totalorder %s47, %s49
      %p53 = scmp.eq.s32.totalorder %s13, 0
      %p54 = por %p52, %p53
      %p55 = scmp.ne.s32.totalorder %s47, %s49
      %p56 = scmp.eq.s32.totalorder %s18, 1
      %p57 = por %p55, %p56
      %p58 = scmp.ne.s32.totalorder %s49, %s50
      %p59 = scmp.eq.s32.totalorder %s18, 0
      %p60 = por %p58, %p59
      %p61 = scmp.ne.s32.totalorder %s49, %s50
      %p62 = scmp.eq.s32.totalorder %s19, 1
      %p63 = por %p61, %p62
      %p65 = scmp.ne.s32.totalorder %s50, %s64
      %p66 = scmp.eq.s32.totalorder %s19, 0
      %p67 = por %p65, %p66
      %s69 = sadd.s32 %s68, 1
      %p72 = scmp.eq.s32.totalorder %s13, 1
      %p73 = scmp.ne.s32.totalorder %s68, %s70
      %p74 = scmp.eq.s32.totalorder %s13, 0
      %p75 = por %p73, %p74
      %p76 = scmp.ne.s32.totalorder %s68, %s70
      %p77 = scmp.eq.s32.totalorder %s18, 1
      %p78 = por %p76, %p77
      %p79 = scmp.ne.s32.totalorder %s70, %s71
      %p80 = scmp.eq.s32.totalorder %s18, 0
      %p81 = por %p79, %p80
      %p82 = scmp.ne.s32.totalorder %s70, %s71
      %p83 = scmp.eq.s32.totalorder %s19, 1
      %p84 = por %p82, %p83
      %p86 = scmp.ne.s32.totalorder %s71, %s85
      %p87 = scmp.eq.s32.totalorder %s19, 0
      %p88 = por %p86, %p87
      %s90 = sadd.s32 %s89, 1
      %p93 = scmp.eq.s32.totalorder %s13, 1
      %p94 = scmp.ne.s32.totalorder %s89, %s91
      %p95 = scmp.eq.s32.totalorder %s13, 0
      %p96 = por %p94, %p95
      %p97 = scmp.ne.s32.totalorder %s89, %s91
      %p98 = scmp.eq.s32.totalorder %s18, 1
      %p99 = por %p97, %p98
      %p100 = scmp.ne.s32.totalorder %s91, %s92
      %p101 = scmp.eq.s32.totalorder %s18, 0
      %p102 = por %p100, %p101
      %p103 = scmp.ne.s32.totalorder %s91, %s92
      %p104 = scmp.eq.s32.totalorder %s19, 1
      %p105 = por %p103, %p104
      %p107 = scmp.ne.s32.totalorder %s92, %s106
      %p108 = scmp.eq.s32.totalorder %s19, 0
      %p109 = por %p107, %p108
      %s110 = ssub.s32 %s13, %s20
      %p111 = scmp.eq.s32.totalorder %s110, 0
      %s113 = sadd.s32 %s112, 1
      %s114 = scalar_select %p111, %s112, %s113
      %p117 = pneg %p111
      %p118 = scmp.eq.s32.totalorder %s13, 1
      %p119 = por %p117, %p118
      %p120 = scmp.ne.s32.totalorder %s112, %s115
      %p121 = scmp.eq.s32.totalorder %s13, 0
      %p122 = por %p120, %p121
      %p123 = scmp.ne.s32.totalorder %s112, %s115
      %p124 = scmp.eq.s32.totalorder %s18, 1
      %p125 = por %p123, %p124
      %p126 = scmp.ne.s32.totalorder %s115, %s116
      %p127 = scmp.eq.s32.totalorder %s18, 0
      %p128 = por %p126, %p127
      %p129 = scmp.ne.s32.totalorder %s115, %s116
      %p130 = scmp.eq.s32.totalorder %s19, 1
      %p131 = por %p129, %p130
      %p133 = scmp.ne.s32.totalorder %s116, %s132
      %p134 = scmp.eq.s32.totalorder %s19, 0
      %p135 = por %p133, %p134
      %p136 = scmp.le.s32.totalorder 1, %s13
      %p137 = scmp.lt.s32.totalorder %s13, 3
      %p138 = pnand %p136, %p137
      %p139 = pneg %p138
      // Predicated region
      $region9: #{tpu_custom_call.1} parent=5 // pred_check
        _
      $region10: #{tpu_custom_call.1} parent=5 // pred_check_branch
        %141 = sbr.rel (%p138) target = $region12
      $region11: #{tpu_custom_call.1} parent=5 // pred_region
        %s142 = ssub.s32 %s13, 1
        // Predicated region
        $region13: #{tpu_custom_call.1} parent=11 // pred_check
          %p143 = pneg %p60
        $region14: #{tpu_custom_call.1} parent=11 // pred_check_branch
          %145 = sbr.rel (%p143) target = $region16
        $region15: #{tpu_custom_call.1} parent=11 // pred_region
          _
        $region16: #{tpu_custom_call.1} parent=11 // pred_fallthru
          _
        // Predicated region
        $region17: #{tpu_custom_call.1} parent=11 // pred_check
          %p146 = pneg %p81
        $region18: #{tpu_custom_call.1} parent=11 // pred_check_branch
          %148 = sbr.rel (%p146) target = $region20
        $region19: #{tpu_custom_call.1} parent=11 // pred_region
          _
        $region20: #{tpu_custom_call.1} parent=11 // pred_fallthru
          _
        // Predicated region
        $region21: #{tpu_custom_call.1} parent=11 // pred_check
          %p149 = pneg %p102
        $region22: #{tpu_custom_call.1} parent=11 // pred_check_branch
          %151 = sbr.rel (%p149) target = $region24
        $region23: #{tpu_custom_call.1} parent=11 // pred_region
          _
        $region24: #{tpu_custom_call.1} parent=11 // pred_fallthru
          _
      $region12: #{tpu_custom_call.1} parent=5 // pred_fallthru
        _
      %p152 = scmp.lt.s32.totalorder %s13, 2
      // Predicated region
      $region25: #{tpu_custom_call.1} parent=5 // pred_check
        %p153 = pneg %p152
      $region26: #{tpu_custom_call.1} parent=5 // pred_check_branch
        %155 = sbr.rel (%p153) target = $region28
      $region27: #{tpu_custom_call.1} parent=5 // pred_region
        // Predicated region
        $region29: #{tpu_custom_call.1} parent=27 // pred_check
          %p156 = pneg %p33
        $region30: #{tpu_custom_call.1} parent=27 // pred_check_branch
          %158 = sbr.rel (%p156) target = $region32
        $region31: #{tpu_custom_call.1} parent=27 // pred_region
          %p159 = scmp.lt.s32.totalorder %s13, 1
          %s160 = scalar_select %p159, %s13, 1
          %s161 = smul.addr %s160, 8
          %s162 = scalar_lea.vmem %s0, %s161
        $region32: #{tpu_custom_call.1} parent=27 // pred_fallthru
          _
      $region28: #{tpu_custom_call.1} parent=5 // pred_fallthru
        _
      %p163 = scmp.le.s32.totalorder 1, %s13
      %p164 = scmp.lt.s32.totalorder %s13, 3
      %p165 = pnand %p163, %p164
      %p166 = pneg %p165
      // Predicated region
      $region33: #{tpu_custom_call.1} parent=5 // pred_check
        _
      $region34: #{tpu_custom_call.1} parent=5 // pred_check_branch
        %168 = sbr.rel (%p165) target = $region36
      $region35: #{tpu_custom_call.1} parent=5 // pred_region
        %s169 = ssub.s32 %s13, 1
        %p170 = scmp.lt.s32.totalorder %s18, 1
        %s171 = scalar_select %p170, %s18, 1
        %s172 = smul.addr %s171, 8
        %s173 = scalar_lea.vmem %s0, %s172
        %p174 = pneg %p39
        %p175 = pneg %p36
        %p176 = pneg %p60
        %p177 = pneg %p57
        %p178 = pneg %p81
        %p179 = pneg %p78
        %p180 = pneg %p102
        %p181 = pneg %p99
        %p182 = pneg %p128
        %p183 = pneg %p125
        %s184 = sand.u32 %s115, 1
        %s185 = scalar_lea.sflag [#allocation3], %s184
        %s186 = sand.u32 %s115, 1
        %s187 = smul.addr %s186, 8
        %s188 = scalar_lea.vmem [#allocation2], %s187
        %p189 = scmp.lt.s32.totalorder %s18, 1
        %s190 = scalar_select %p189, %s18, 1
        %s191 = smul.addr %s190, 8
        %s192 = scalar_lea.vmem %s0, %s191
        %v193 = vld [vmem:[%s192] sm:$0xff]
        %v194 = vld [vmem:[%s1] sm:$0xff]
        %v195 = vld [vmem:[%s1 + $0x8] sm:$0xff]
        %v196 = vld [vmem:[%s1 + $0x10] sm:$0xff]
        %v197 = vld [vmem:[%s1 + $0x18] sm:$0xff]
        %v198 = vld [vmem:[%s1 + $0x20] sm:$0xff]
        %v199 = vld [vmem:[%s1 + $0x28] sm:$0xff]
        %v200 = vld [vmem:[%s1 + $0x30] sm:$0xff]
        %v201 = vld [vmem:[%s1 + $0x38] sm:$0xff]
        %vm202 = vcmask 261120
        %v204 = vsel %vm202, %v193, 0
        %206 = vmatprep.subr.mxu0 0.0
        %207 = vmatpush1.msra.mxu0 0.0
        %208 = vmatprep.subr.mxu0 0.0
        %209 = vmatpush1.msra.mxu0 0.0
        %210 = vmatprep.subr.mxu0 0.0
        %211 = vmatpush1.msra.mxu0 0.0
        %212 = vmatprep.subr.mxu0 0.0
        %213 = vmatpush1.msra.mxu0 0.0
        %214 = vmatprep.subr.mxu0 0.0
        %215 = vmatpush1.msra.mxu0 0.0
        %216 = vmatprep.subr.mxu0 0.0
        %217 = vmatpush1.msra.mxu0 0.0
        %218 = vmatprep.subr.mxu0 0.0
        %219 = vmatpush1.msra.mxu0 0.0
        %220 = vmatprep.subr.mxu0 0.0
        %221 = vmatpush1.msra.mxu0 0.0
        %222 = vmatprep.subr.mxu0 0.0
        %223 = vmatpush1.msra.mxu0 0.0
        %224 = vmatprep.subr.mxu0 0.0
        %225 = vmatpush1.msra.mxu0 0.0
        %226 = vmatprep.subr.mxu0 0.0
        %227 = vmatpush1.msra.mxu0 0.0
        %228 = vmatprep.subr.mxu0 0.0
        %229 = vmatpush1.msra.mxu0 0.0
        %230 = vmatprep.subr.mxu0 %v201
        %231 = vmatpush1.msra.mxu0 %v200
        %232 = vmatprep.subr.mxu0 %v199
        %233 = vmatpush1.msra.mxu0 %v198
        %234 = vmatprep.subr.mxu0 %v197
        %235 = vmatpush1.msra.mxu0 %v196
        %236 = vmatprep.subr.mxu0 %v195
        %237 = vmatpush1.msra.mxu0 %v194
        %238 = vmatprep.subr.mxu0 0.0
        %239 = vmatpush2.msra.mxu0 0.0
        %240 = vmatprep.subr.mxu0 0.0
        %241 = vmatpush2.msra.mxu0 0.0
        %242 = vmatprep.subr.mxu0 0.0
        %243 = vmatpush2.msra.mxu0 0.0
        %244 = vmatprep.subr.mxu0 0.0
        %245 = vmatpush2.msra.mxu0 0.0
        %246 = vmatprep.subr.mxu0 0.0
        %247 = vmatpush2.msra.mxu0 0.0
        %248 = vmatprep.subr.mxu0 0.0
        %249 = vmatpush2.msra.mxu0 0.0
        %250 = vmatprep.subr.mxu0 0.0
        %251 = vmatpush2.msra.mxu0 0.0
        %252 = vmatprep.subr.mxu0 0.0
        %253 = vmatpush2.msra.mxu0 0.0
        %254 = vmatprep.subr.mxu0 0.0
        %255 = vmatpush2.msra.mxu0 0.0
        %256 = vmatprep.subr.mxu0 0.0
        %257 = vmatpush2.msra.mxu0 0.0
        %258 = vmatprep.subr.mxu0 0.0
        %259 = vmatpush2.msra.mxu0 0.0
        %260 = vmatprep.subr.mxu0 0.0
        %261 = vmatpush2.msra.mxu0 0.0
        %262 = vmatprep.subr.mxu0 0.0
        %263 = vmatpush2.msra.mxu0 0.0
        %264 = vmatprep.subr.mxu0 0.0
        %265 = vmatpush2.msra.mxu0 0.0
        %266 = vmatprep.subr.mxu0 0.0
        %267 = vmatpush2.msra.mxu0 0.0
        %268 = vmatprep.subr.mxu0 0.0
        %269 = vmatpush2.msra.mxu0 0.0
        %270 = vmatprep.mubr.f32.mxu0 0.0
        %271 = vmatmul.mubr.f32.gmra.mxu0 %v204
        %v272 = vpop.f32.mrf.mxu0
        %v273 = vadd.f32 0.0, %v272
        %v274 = vpop.f32.mrf.mxu0
        %v275 = vadd.f32 0.0, %v274
        %276 = vdwg.mxu0
        %278 = vrot.lane.b32.xlu0 %v273, 96
        %v279 = vpop.permute.xlu0 %278
        %v281 = vmul.f32 %v273, 0.17677669
        %v282 = vmul.f32 %v279, 0.17677669
        %284 = vrot.lane.b32.xlu0 %v275, 96
        %v285 = vpop.permute.xlu0 %284
        %v287 = vlaneseq
        %v288 = vshrl.u32 %v287, 7
        %v289 = vlaneseq
        %v290 = vand.u32 %v289, 127
        %vm291 = vcmp.gt.s32.totalorder %v290, %v288
        %v292 = vsel %vm291, -1e+30, 0.0
        %293 = vrot.lane.b32.xlu0 %v273, 64
        %v294 = vpop.permute.xlu0 %293
        %v296 = vsel %vm202, %v281, 0
        %v298 = vsel %vm202, %v294, 0
        %300 = vmatprep.subr.mxu0 0.0
        %301 = vmatpush1.xpose.msra.mxu0 0.0
        %302 = vmatprep.subr.mxu0 0.0
        %303 = vmatpush1.xpose.msra.mxu0 0.0
        %304 = vmatprep.subr.mxu0 0.0
        %305 = vmatpush1.xpose.msra.mxu0 0.0
        %306 = vmatprep.subr.mxu0 0.0
        %307 = vmatpush1.xpose.msra.mxu0 0.0
        %308 = vmatprep.subr.mxu0 0.0
        %309 = vmatpush1.xpose.msra.mxu0 0.0
        %310 = vmatprep.subr.mxu0 0.0
        %311 = vmatpush1.xpose.msra.mxu0 0.0
        %312 = vmatprep.subr.mxu0 0.0
        %313 = vmatpush1.xpose.msra.mxu0 0.0
        %314 = vmatprep.subr.mxu0 0.0
        %315 = vmatpush1.xpose.msra.mxu0 0.0
        %316 = vmatprep.subr.mxu0 0.0
        %317 = vmatpush1.xpose.msra.mxu0 0.0
        %318 = vmatprep.subr.mxu0 0.0
        %319 = vmatpush1.xpose.msra.mxu0 0.0
        %320 = vmatprep.subr.mxu0 0.0
        %321 = vmatpush1.xpose.msra.mxu0 0.0
        %322 = vmatprep.subr.mxu0 0.0
        %323 = vmatpush1.xpose.msra.mxu0 0.0
        %324 = vmatprep.subr.mxu0 0.0
        %325 = vmatpush1.xpose.msra.mxu0 0.0
        %326 = vmatprep.subr.mxu0 0.0
        %327 = vmatpush1.xpose.msra.mxu0 0.0
        %328 = vmatprep.subr.mxu0 0.0
        %329 = vmatpush1.xpose.msra.mxu0 0.0
        %330 = vmatprep.subr.mxu0 0.0
        %331 = vmatpush1.xpose.msra.mxu0 %v298
        %332 = vmatprep.subr.mxu0 0.0
        %333 = vmatpush2.xpose.msra.mxu0 0.0
        %334 = vmatprep.subr.mxu0 0.0
        %335 = vmatpush2.xpose.msra.mxu0 0.0
        %336 = vmatprep.subr.mxu0 0.0
        %337 = vmatpush2.xpose.msra.mxu0 0.0
        %338 = vmatprep.subr.mxu0 0.0
        %339 = vmatpush2.xpose.msra.mxu0 0.0
        %340 = vmatprep.subr.mxu0 0.0
        %341 = vmatpush2.xpose.msra.mxu0 0.0
        %342 = vmatprep.subr.mxu0 0.0
        %343 = vmatpush2.xpose.msra.mxu0 0.0
        %344 = vmatprep.subr.mxu0 0.0
        %345 = vmatpush2.xpose.msra.mxu0 0.0
        %346 = vmatprep.subr.mxu0 0.0
        %347 = vmatpush2.xpose.msra.mxu0 0.0
        %348 = vmatprep.subr.mxu0 0.0
        %349 = vmatpush2.xpose.msra.mxu0 0.0
        %350 = vmatprep.subr.mxu0 0.0
        %351 = vmatpush2.xpose.msra.mxu0 0.0
        %352 = vmatprep.subr.mxu0 0.0
        %353 = vmatpush2.xpose.msra.mxu0 0.0
        %354 = vmatprep.subr.mxu0 0.0
        %355 = vmatpush2.xpose.msra.mxu0 0.0
        %356 = vmatprep.subr.mxu0 0.0
        %357 = vmatpush2.xpose.msra.mxu0 0.0
        %358 = vmatprep.subr.mxu0 0.0
        %359 = vmatpush2.xpose.msra.mxu0 0.0
        %360 = vmatprep.subr.mxu0 0.0
        %361 = vmatpush2.xpose.msra.mxu0 0.0
        %362 = vmatprep.subr.mxu0 0.0
        %363 = vmatpush2.xpose.msra.mxu0 0.0
        %364 = vmatprep.mubr.f32.mxu0 0.0
        %365 = vmatmul.mubr.f32.gmra.mxu0 %v296
        %v366 = vpop.f32.mrf.mxu0
        %v367 = vadd.f32 %v292, %v366
        %v368 = vpop.f32.mrf.mxu0
        %369 = vdwg.mxu0
        %370 = vrot.lane.b32.xlu0 %v279, 64
        %v371 = vpop.permute.xlu0 %370
        %v373 = vsel %vm202, %v282, 0
        %v375 = vsel %vm202, %v371, 0
        %377 = vmatprep.subr.mxu0 0.0
        %378 = vmatpush1.xpose.msra.mxu0 0.0
        %379 = vmatprep.subr.mxu0 0.0
        %380 = vmatpush1.xpose.msra.mxu0 0.0
        %381 = vmatprep.subr.mxu0 0.0
        %382 = vmatpush1.xpose.msra.mxu0 0.0
        %383 = vmatprep.subr.mxu0 0.0
        %384 = vmatpush1.xpose.msra.mxu0 0.0
        %385 = vmatprep.subr.mxu0 0.0
        %386 = vmatpush1.xpose.msra.mxu0 0.0
        %387 = vmatprep.subr.mxu0 0.0
        %388 = vmatpush1.xpose.msra.mxu0 0.0
        %389 = vmatprep.subr.mxu0 0.0
        %390 = vmatpush1.xpose.msra.mxu0 0.0
        %391 = vmatprep.subr.mxu0 0.0
        %392 = vmatpush1.xpose.msra.mxu0 0.0
        %393 = vmatprep.subr.mxu0 0.0
        %394 = vmatpush1.xpose.msra.mxu0 0.0
        %395 = vmatprep.subr.mxu0 0.0
        %396 = vmatpush1.xpose.msra.mxu0 0.0
        %397 = vmatprep.subr.mxu0 0.0
        %398 = vmatpush1.xpose.msra.mxu0 0.0
        %399 = vmatprep.subr.mxu0 0.0
        %400 = vmatpush1.xpose.msra.mxu0 0.0
        %401 = vmatprep.subr.mxu0 0.0
        %402 = vmatpush1.xpose.msra.mxu0 0.0
        %403 = vmatprep.subr.mxu0 0.0
        %404 = vmatpush1.xpose.msra.mxu0 0.0
        %405 = vmatprep.subr.mxu0 0.0
        %406 = vmatpush1.xpose.msra.mxu0 0.0
        %407 = vmatprep.subr.mxu0 0.0
        %408 = vmatpush1.xpose.msra.mxu0 %v375
        %409 = vmatprep.subr.mxu0 0.0
        %410 = vmatpush2.xpose.msra.mxu0 0.0
        %411 = vmatprep.subr.mxu0 0.0
        %412 = vmatpush2.xpose.msra.mxu0 0.0
        %413 = vmatprep.subr.mxu0 0.0
        %414 = vmatpush2.xpose.msra.mxu0 0.0
        %415 = vmatprep.subr.mxu0 0.0
        %416 = vmatpush2.xpose.msra.mxu0 0.0
        %417 = vmatprep.subr.mxu0 0.0
        %418 = vmatpush2.xpose.msra.mxu0 0.0
        %419 = vmatprep.subr.mxu0 0.0
        %420 = vmatpush2.xpose.msra.mxu0 0.0
        %421 = vmatprep.subr.mxu0 0.0
        %422 = vmatpush2.xpose.msra.mxu0 0.0
        %423 = vmatprep.subr.mxu0 0.0
        %424 = vmatpush2.xpose.msra.mxu0 0.0
        %425 = vmatprep.subr.mxu0 0.0
        %426 = vmatpush2.xpose.msra.mxu0 0.0
        %427 = vmatprep.subr.mxu0 0.0
        %428 = vmatpush2.xpose.msra.mxu0 0.0
        %429 = vmatprep.subr.mxu0 0.0
        %430 = vmatpush2.xpose.msra.mxu0 0.0
        %431 = vmatprep.subr.mxu0 0.0
        %432 = vmatpush2.xpose.msra.mxu0 0.0
        %433 = vmatprep.subr.mxu0 0.0
        %434 = vmatpush2.xpose.msra.mxu0 0.0
        %435 = vmatprep.subr.mxu0 0.0
        %436 = vmatpush2.xpose.msra.mxu0 0.0
        %437 = vmatprep.subr.mxu0 0.0
        %438 = vmatpush2.xpose.msra.mxu0 0.0
        %439 = vmatprep.subr.mxu0 0.0
        %440 = vmatpush2.xpose.msra.mxu0 0.0
        %441 = vmatprep.mubr.f32.mxu0 0.0
        %442 = vmatmul.mubr.f32.gmra.mxu0 %v373
        %v443 = vpop.f32.mrf.mxu0
        %v444 = vadd.f32 %v292, %v443
        %v445 = vpop.f32.mrf.mxu0
        %446 = vdwg.mxu0
        %vm447 = vcmask 64512
        %v448 = vsel %vm447, %v367, -inf
        %449 = vmax.xlane.f32.xlu0 %v448
        %v450 = vpop.xlane.xlu0 %449
        %v451 = vsel %vm447, %v444, -inf
        %452 = vmax.xlane.f32.xlu0 %v451
        %v453 = vpop.xlane.xlu0 %452
        %v454 = vsub.f32 %v367, %v450
        %v455 = vsub.f32 %v444, %v453
        %v456 = vmul.f32 %v454, 1.442695
        %v457 = vpow.pop %v456
        %v458 = vmul.f32 %v455, 1.442695
        %v459 = vpow.pop %v458
        %v460 = vsel %vm447, %v457, 0.0
        %461 = vadd.xlane.f32.xlu0 %v460
        %v462 = vpop.xlane.xlu0 %461
        %v463 = vsel %vm447, %v459, 0.0
        %464 = vadd.xlane.f32.xlu0 %v463
        %v465 = vpop.xlane.xlu0 %464
        %v466 = vrcp.pop %v462
        %v467 = vmul.f32 %v457, %v466
        %v468 = vrcp.pop %v465
        %v469 = vmul.f32 %v459, %v468
        %v471 = vsel %vm447, %v467, 0
        %473 = vmatprep.subr.mxu0 0.0
        %474 = vmatpush1.msra.mxu0 0.0
        %475 = vmatprep.subr.mxu0 0.0
        %476 = vmatpush1.msra.mxu0 0.0
        %477 = vmatprep.subr.mxu0 0.0
        %478 = vmatpush1.msra.mxu0 0.0
        %479 = vmatprep.subr.mxu0 0.0
        %480 = vmatpush1.msra.mxu0 0.0
        %481 = vmatprep.subr.mxu0 0.0
        %482 = vmatpush1.msra.mxu0 0.0
        %483 = vmatprep.subr.mxu0 0.0
        %484 = vmatpush1.msra.mxu0 0.0
        %485 = vmatprep.subr.mxu0 0.0
        %486 = vmatpush1.msra.mxu0 0.0
        %487 = vmatprep.subr.mxu0 0.0
        %488 = vmatpush1.msra.mxu0 0.0
        %489 = vmatprep.subr.mxu0 0.0
        %490 = vmatpush1.msra.mxu0 0.0
        %491 = vmatprep.subr.mxu0 0.0
        %492 = vmatpush1.msra.mxu0 0.0
        %493 = vmatprep.subr.mxu0 0.0
        %494 = vmatpush1.msra.mxu0 0.0
        %495 = vmatprep.subr.mxu0 0.0
        %496 = vmatpush1.msra.mxu0 0.0
        %497 = vmatprep.subr.mxu0 0.0
        %498 = vmatpush1.msra.mxu0 0.0
        %499 = vmatprep.subr.mxu0 0.0
        %500 = vmatpush1.msra.mxu0 0.0
        %501 = vmatprep.subr.mxu0 0.0
        %502 = vmatpush1.msra.mxu0 0.0
        %503 = vmatprep.subr.mxu0 0.0
        %504 = vmatpush1.msra.mxu0 %v275
        %505 = vmatprep.subr.mxu0 0.0
        %506 = vmatpush2.msra.mxu0 0.0
        %507 = vmatprep.subr.mxu0 0.0
        %508 = vmatpush2.msra.mxu0 0.0
        %509 = vmatprep.subr.mxu0 0.0
        %510 = vmatpush2.msra.mxu0 0.0
        %511 = vmatprep.subr.mxu0 0.0
        %512 = vmatpush2.msra.mxu0 0.0
        %513 = vmatprep.subr.mxu0 0.0
        %514 = vmatpush2.msra.mxu0 0.0
        %515 = vmatprep.subr.mxu0 0.0
        %516 = vmatpush2.msra.mxu0 0.0
        %517 = vmatprep.subr.mxu0 0.0
        %518 = vmatpush2.msra.mxu0 0.0
        %519 = vmatprep.subr.mxu0 0.0
        %520 = vmatpush2.msra.mxu0 0.0
        %521 = vmatprep.subr.mxu0 0.0
        %522 = vmatpush2.msra.mxu0 0.0
        %523 = vmatprep.subr.mxu0 0.0
        %524 = vmatpush2.msra.mxu0 0.0
        %525 = vmatprep.subr.mxu0 0.0
        %526 = vmatpush2.msra.mxu0 0.0
        %527 = vmatprep.subr.mxu0 0.0
        %528 = vmatpush2.msra.mxu0 0.0
        %529 = vmatprep.subr.mxu0 0.0
        %530 = vmatpush2.msra.mxu0 0.0
        %531 = vmatprep.subr.mxu0 0.0
        %532 = vmatpush2.msra.mxu0 0.0
        %533 = vmatprep.subr.mxu0 0.0
        %534 = vmatpush2.msra.mxu0 0.0
        %535 = vmatprep.subr.mxu0 0.0
        %536 = vmatpush2.msra.mxu0 0.0
        %537 = vmatprep.mubr.f32.mxu0 0.0
        %538 = vmatmul.mubr.f32.gmra.mxu0 %v471
        %v539 = vpop.f32.mrf.mxu0
        %v540 = vadd.f32 0.0, %v539
        %v541 = vpop.f32.mrf.mxu0
        %542 = vdwg.mxu0
        %v544 = vsel %vm447, %v469, 0
        %546 = vmatprep.subr.mxu0 0.0
        %547 = vmatpush1.msra.mxu0 0.0
        %548 = vmatprep.subr.mxu0 0.0
        %549 = vmatpush1.msra.mxu0 0.0
        %550 = vmatprep.subr.mxu0 0.0
        %551 = vmatpush1.msra.mxu0 0.0
        %552 = vmatprep.subr.mxu0 0.0
        %553 = vmatpush1.msra.mxu0 0.0
        %554 = vmatprep.subr.mxu0 0.0
        %555 = vmatpush1.msra.mxu0 0.0
        %556 = vmatprep.subr.mxu0 0.0
        %557 = vmatpush1.msra.mxu0 0.0
        %558 = vmatprep.subr.mxu0 0.0
        %559 = vmatpush1.msra.mxu0 0.0
        %560 = vmatprep.subr.mxu0 0.0
        %561 = vmatpush1.msra.mxu0 0.0
        %562 = vmatprep.subr.mxu0 0.0
        %563 = vmatpush1.msra.mxu0 0.0
        %564 = vmatprep.subr.mxu0 0.0
        %565 = vmatpush1.msra.mxu0 0.0
        %566 = vmatprep.subr.mxu0 0.0
        %567 = vmatpush1.msra.mxu0 0.0
        %568 = vmatprep.subr.mxu0 0.0
        %569 = vmatpush1.msra.mxu0 0.0
        %570 = vmatprep.subr.mxu0 0.0
        %571 = vmatpush1.msra.mxu0 0.0
        %572 = vmatprep.subr.mxu0 0.0
        %573 = vmatpush1.msra.mxu0 0.0
        %574 = vmatprep.subr.mxu0 0.0
        %575 = vmatpush1.msra.mxu0 0.0
        %576 = vmatprep.subr.mxu0 0.0
        %577 = vmatpush1.msra.mxu0 %v285
        %578 = vmatprep.subr.mxu0 0.0
        %579 = vmatpush2.msra.mxu0 0.0
        %580 = vmatprep.subr.mxu0 0.0
        %581 = vmatpush2.msra.mxu0 0.0
        %582 = vmatprep.subr.mxu0 0.0
        %583 = vmatpush2.msra.mxu0 0.0
        %584 = vmatprep.subr.mxu0 0.0
        %585 = vmatpush2.msra.mxu0 0.0
        %586 = vmatprep.subr.mxu0 0.0
        %587 = vmatpush2.msra.mxu0 0.0
        %588 = vmatprep.subr.mxu0 0.0
        %589 = vmatpush2.msra.mxu0 0.0
        %590 = vmatprep.subr.mxu0 0.0
        %591 = vmatpush2.msra.mxu0 0.0
        %592 = vmatprep.subr.mxu0 0.0
        %593 = vmatpush2.msra.mxu0 0.0
        %594 = vmatprep.subr.mxu0 0.0
        %595 = vmatpush2.msra.mxu0 0.0
        %596 = vmatprep.subr.mxu0 0.0
        %597 = vmatpush2.msra.mxu0 0.0
        %598 = vmatprep.subr.mxu0 0.0
        %599 = vmatpush2.msra.mxu0 0.0
        %600 = vmatprep.subr.mxu0 0.0
        %601 = vmatpush2.msra.mxu0 0.0
        %602 = vmatprep.subr.mxu0 0.0
        %603 = vmatpush2.msra.mxu0 0.0
        %604 = vmatprep.subr.mxu0 0.0
        %605 = vmatpush2.msra.mxu0 0.0
        %606 = vmatprep.subr.mxu0 0.0
        %607 = vmatpush2.msra.mxu0 0.0
        %608 = vmatprep.subr.mxu0 0.0
        %609 = vmatpush2.msra.mxu0 0.0
        %610 = vmatprep.mubr.f32.mxu0 0.0
        %611 = vmatmul.mubr.f32.gmra.mxu0 %v544
        %v612 = vpop.f32.mrf.mxu0
        %v613 = vadd.f32 0.0, %v612
        %v614 = vpop.f32.mrf.mxu0
        %615 = vdwg.mxu0
        %617 = vrot.lane.b32.xlu0 %v613, 32
        %v618 = vpop.permute.xlu0 %617
        %v620 = vsel %vm202, %v540, %v618
        %v621 = vld [vmem:[%s2] sm:$0xff]
        %v622 = vld [vmem:[%s2 + $0x8] sm:$0xff]
        %v623 = vld [vmem:[%s2 + $0x10] sm:$0xff]
        %v624 = vld [vmem:[%s2 + $0x18] sm:$0xff]
        %v625 = vld [vmem:[%s2 + $0x20] sm:$0xff]
        %v626 = vld [vmem:[%s2 + $0x28] sm:$0xff]
        %v627 = vld [vmem:[%s2 + $0x30] sm:$0xff]
        %v628 = vld [vmem:[%s2 + $0x38] sm:$0xff]
        %v629 = vld [vmem:[%s3] sm:$0x1]
        %v631 = vlaneseq
        %v632 = vshrl.u32 %v631, 7
        %v633 = vsub.s32 0, %v632
        %v634 = vrot.slane %v629, %v633
        %vm636 = vcmask 523264
        %v638 = vsel %vm636, %v620, 0
        %640 = vmatprep.subr.mxu0 0.0
        %641 = vmatpush1.msra.mxu0 0.0
        %642 = vmatprep.subr.mxu0 0.0
        %643 = vmatpush1.msra.mxu0 0.0
        %644 = vmatprep.subr.mxu0 0.0
        %645 = vmatpush1.msra.mxu0 0.0
        %646 = vmatprep.subr.mxu0 0.0
        %647 = vmatpush1.msra.mxu0 0.0
        %648 = vmatprep.subr.mxu0 0.0
        %649 = vmatpush1.msra.mxu0 0.0
        %650 = vmatprep.subr.mxu0 0.0
        %651 = vmatpush1.msra.mxu0 0.0
        %652 = vmatprep.subr.mxu0 0.0
        %653 = vmatpush1.msra.mxu0 0.0
        %654 = vmatprep.subr.mxu0 0.0
        %655 = vmatpush1.msra.mxu0 0.0
        %656 = vmatprep.subr.mxu0 0.0
        %657 = vmatpush1.msra.mxu0 %v628
        %658 = vmatprep.subr.mxu0 0.0
        %659 = vmatpush1.msra.mxu0 %v627
        %660 = vmatprep.subr.mxu0 0.0
        %661 = vmatpush1.msra.mxu0 %v626
        %662 = vmatprep.subr.mxu0 0.0
        %663 = vmatpush1.msra.mxu0 %v625
        %664 = vmatprep.subr.mxu0 0.0
        %665 = vmatpush1.msra.mxu0 %v624
        %666 = vmatprep.subr.mxu0 0.0
        %667 = vmatpush1.msra.mxu0 %v623
        %668 = vmatprep.subr.mxu0 0.0
        %669 = vmatpush1.msra.mxu0 %v622
        %670 = vmatprep.subr.mxu0 0.0
        %671 = vmatpush1.msra.mxu0 %v621
        %672 = vmatprep.subr.mxu0 0.0
        %673 = vmatpush2.msra.mxu0 0.0
        %674 = vmatprep.subr.mxu0 0.0
        %675 = vmatpush2.msra.mxu0 0.0
        %676 = vmatprep.subr.mxu0 0.0
        %677 = vmatpush2.msra.mxu0 0.0
        %678 = vmatprep.subr.mxu0 0.0
        %679 = vmatpush2.msra.mxu0 0.0
        %680 = vmatprep.subr.mxu0 0.0
        %681 = vmatpush2.msra.mxu0 0.0
        %682 = vmatprep.subr.mxu0 0.0
        %683 = vmatpush2.msra.mxu0 0.0
        %684 = vmatprep.subr.mxu0 0.0
        %685 = vmatpush2.msra.mxu0 0.0
        %686 = vmatprep.subr.mxu0 0.0
        %687 = vmatpush2.msra.mxu0 0.0
        %688 = vmatprep.subr.mxu0 0.0
        %689 = vmatpush2.msra.mxu0 0.0
        %690 = vmatprep.subr.mxu0 0.0
        %691 = vmatpush2.msra.mxu0 0.0
        %692 = vmatprep.subr.mxu0 0.0
        %693 = vmatpush2.msra.mxu0 0.0
        %694 = vmatprep.subr.mxu0 0.0
        %695 = vmatpush2.msra.mxu0 0.0
        %696 = vmatprep.subr.mxu0 0.0
        %697 = vmatpush2.msra.mxu0 0.0
        %698 = vmatprep.subr.mxu0 0.0
        %699 = vmatpush2.msra.mxu0 0.0
        %700 = vmatprep.subr.mxu0 0.0
        %701 = vmatpush2.msra.mxu0 0.0
        %702 = vmatprep.subr.mxu0 0.0
        %703 = vmatpush2.msra.mxu0 0.0
        %704 = vmatprep.mubr.f32.mxu0 0.0
        %705 = vmatmul.mubr.f32.gmra.mxu0 %v638
        %v706 = vpop.f32.mrf.mxu0
        %v707 = vadd.f32 %v634, %v706
        %v708 = vpop.f32.mrf.mxu0
        %709 = vdwg.mxu0
        %710 = vst.msk [vmem:[%s188] sm:$0xff] %vm202, %v707
        %s711 = sand.u32 %s115, 1
        %s712 = scalar_lea.sflag [#allocation3], %s711
        %s713 = sand.u32 %s115, 1
        %s714 = smul.addr %s713, 8
        %s715 = scalar_lea.vmem [#allocation2], %s714
        // Predicated region
        $region37: #{tpu_custom_call.1} parent=35 // pred_check
          %p716 = pneg %p125
        $region38: #{tpu_custom_call.1} parent=35 // pred_check_branch
          %718 = sbr.rel (%p716) target = $region40
        $region39: #{tpu_custom_call.1} parent=35 // pred_region
          %s720 = ssub.s32 128, 128
          %721 = vsyncadd %s712, %s720
          %s722 = smul.addr %s18, 128
          %s723 = scalar_lea.hbm %s4, %s722
          %s725 = sshll.u32 %s715, 4
          %s726 = int_to_ptr.vmem [resolvable:$true] %s725
          %728 = dma.vmem_to_hbm [thread:$0]  %s726, 128, %s723, %s712
        $region40: #{tpu_custom_call.1} parent=35 // pred_fallthru
          _
      $region36: #{tpu_custom_call.1} parent=5 // pred_fallthru
        _
      %p729 = scmp.le.s32.totalorder 2, %s13
      // Predicated region
      $region41: #{tpu_custom_call.1} parent=5 // pred_check
        %p730 = pneg %p729
      $region42: #{tpu_custom_call.1} parent=5 // pred_check_branch
        %732 = sbr.rel (%p730) target = $region44
      $region43: #{tpu_custom_call.1} parent=5 // pred_region
        %s733 = ssub.s32 %s13, 2
        // Predicated region
        $region45: #{tpu_custom_call.1} parent=43 // pred_check
          %p734 = pneg %p131
        $region46: #{tpu_custom_call.1} parent=43 // pred_check_branch
          %736 = sbr.rel (%p734) target = $region48
        $region47: #{tpu_custom_call.1} parent=43 // pred_region
          %s737 = sand.u32 %s116, 1
          %s738 = scalar_lea.sflag [#allocation3], %s737
          %s739 = sand.u32 %s116, 1
          %s740 = smul.addr %s739, 8
          %s741 = scalar_lea.vmem [#allocation2], %s740
          %742 = dma.done %s738, 128
        $region48: #{tpu_custom_call.1} parent=43 // pred_fallthru
          _
      $region44: #{tpu_custom_call.1} parent=5 // pred_fallthru
        _
    $region6: #{tpu_custom_call.1} parent=1 // loop_footer
      %s17 = sadd.s32 1, %s13
    $region7: #{tpu_custom_call.1} parent=1 // loop_footer_branch
      %12 = sbr.rel target = $region3
    $region8: #{tpu_custom_call.1} parent=1 // loop_exit
      _
    %743 = vsyncpa [#allocation3], 1
    %s744 = scalar_lea.sflag [#allocation3], 1
    %745 = vsyncpa %s744, 1

</llo_original>
